<compile_context>
chip_gen: v5e
topology: v5e:2x2
jax: 0.10.0
libtpu: 0.0.40
codegen_flags: <defaults>
</compile_context>

<pallas_src>
import jax
import jax.numpy as jnp
from jax.experimental import pallas as pl
from jax.experimental.pallas import tpu as pltpu

_MAX_BATCH_TILE = 512  # rows per grid step once the batch is large (mult. of 128)


def _round_up(x, m):
    return (x + m - 1) // m * m


def qnet_kernel(s_ref, a_ref,
                w1s_ref, w1a_ref, b1_ref,
                w2_ref, b2_ref,
                w3_ref, b3_ref,
                o_ref):
    # Layer 1 (batch on sublanes): cat(state, action) @ W1 + b1 as a split
    # matmul — exactly equivalent, avoids a lane-axis concat of widths 4/2.
    h1 = (jnp.dot(s_ref[...], w1s_ref[...], preferred_element_type=jnp.float32)
          + jnp.dot(a_ref[...], w1a_ref[...], preferred_element_type=jnp.float32)
          + b1_ref[...])
    h1 = jnp.maximum(h1, 0.0)

    # Layer 2 in transposed orientation: h2^T = W2 @ h1^T, realized as an NT
    # dot_general (contract the H_in axis of both operands). Result is
    # (H, TB) with the batch on the lane axis.
    h2t = jax.lax.dot_general(
        w2_ref[...], h1,
        dimension_numbers=(((1,), (1,)), ((), ())),
        preferred_element_type=jnp.float32) + b2_ref[...]
    h2t = jnp.maximum(h2t, 0.0)

    # Layer 3: output width 1 -> broadcast multiply (VPU) + sublane reduce
    # (XLU) instead of a degenerate MXU matmul. Store is lane-dense (1, TB).
    o_ref[...] = jnp.sum(w3_ref[...] * h2t, axis=0, keepdims=True) + b3_ref[...]


def prepare_params(params, state_dim):
    """One-time conversion of PyTorch-convention params to kernel layout.

    Call once per parameter update — NOT per forward pass (keeps transposes,
    splits and reshapes out of the hot path).
    """
    h = params["w1"].shape[0]
    w1_t = jnp.asarray(params["w1"]).T          # (S+A, H)
    return {
        "w1s": w1_t[:state_dim, :],             # (S, H)
        "w1a": w1_t[state_dim:, :],             # (A, H)
        "b1": params["b1"].reshape(1, h),       # row bias (batch on sublanes)
        "w2": jnp.asarray(params["w2"]),        # (H, H) PyTorch (out,in); used NT
        "b2": params["b2"].reshape(h, 1),       # column bias (batch on lanes)
        "w3": params["w3"].reshape(h, 1),       # (H, 1) column
        "b3": params["b3"].reshape(1, 1),
    }


@jax.jit
def qnet_forward(state, action, kparams):
    """Fused QNet forward. state: (B,S) f32, action: (B,A) f32 -> (B,1) f32."""
    B, S = state.shape
    _, A = action.shape
    H = kparams["b1"].shape[1]

    # Batch tiling: one resident tile for small batches; 512-row tiles
    # (multiple of 128 -> lane-dense output blocks) for large ones.
    if _round_up(B, 8) <= _MAX_BATCH_TILE:
        tile = _round_up(B, 8)
    else:
        tile = _MAX_BATCH_TILE
    b_pad = _round_up(B, tile)
    if b_pad != B:
        state = jnp.pad(state, ((0, b_pad - B), (0, 0)))
        action = jnp.pad(action, ((0, b_pad - B), (0, 0)))
    n_tiles = b_pad // tile

    out = pl.pallas_call(
        qnet_kernel,
        out_shape=jax.ShapeDtypeStruct((1, b_pad), jnp.float32),
        grid=(n_tiles,),
        in_specs=[
            pl.BlockSpec((tile, S), lambda i: (i, 0)),   # state tile
            pl.BlockSpec((tile, A), lambda i: (i, 0)),   # action tile
            pl.BlockSpec((S, H), lambda i: (0, 0)),      # w1s (resident)
            pl.BlockSpec((A, H), lambda i: (0, 0)),      # w1a (resident)
            pl.BlockSpec((1, H), lambda i: (0, 0)),      # b1
            pl.BlockSpec((H, H), lambda i: (0, 0)),      # w2
            pl.BlockSpec((H, 1), lambda i: (0, 0)),      # b2
            pl.BlockSpec((H, 1), lambda i: (0, 0)),      # w3
            pl.BlockSpec((1, 1), lambda i: (0, 0)),      # b3
        ],
        out_specs=pl.BlockSpec((1, tile), lambda i: (0, i)),  # lane-dense Q row
        compiler_params=pltpu.CompilerParams(
            dimension_semantics=("parallel",)),               # v7x: 2 TCs
    )(state, action,
      kparams["w1s"], kparams["w1a"], kparams["b1"],
      kparams["w2"], kparams["b2"], kparams["w3"], kparams["b3"])

    # (1, b_pad) row -> (B, 1); slicing a row + reshape is layout-trivial.
    return out[:, :B].reshape(B, 1)


def init_params(key, state_dim, num_actions, hidden_size):
    """Deterministic synthetic init (PyTorch Linear shapes: (out, in))."""
    in_dim = state_dim + num_actions
    ks = jax.random.split(key, 6)
    s1 = 1.0 / jnp.sqrt(in_dim)
    s2 = 1.0 / jnp.sqrt(hidden_size)
    return {
        "w1": jax.random.uniform(ks[0], (hidden_size, in_dim), jnp.float32, -s1, s1),
        "b1": jax.random.uniform(ks[1], (hidden_size,), jnp.float32, -s1, s1),
        "w2": jax.random.uniform(ks[2], (hidden_size, hidden_size), jnp.float32, -s2, s2),
        "b2": jax.random.uniform(ks[3], (hidden_size,), jnp.float32, -s2, s2),
        "w3": jax.random.uniform(ks[4], (1, hidden_size), jnp.float32, -s2, s2),
        "b3": jax.random.uniform(ks[5], (1,), jnp.float32, -s2, s2),
    }


def qnet_ref(state, action, params):
    """Pure-JAX reference for correctness check."""
    x = jnp.concatenate([state, action], axis=-1)
    x = jax.nn.relu(x @ params["w1"].T + params["b1"])
    x = jax.nn.relu(x @ params["w2"].T + params["b2"])
    return x @ params["w3"].T + params["b3"]


if __name__ == "__main__":
    # CartPole-v0: observation dim = 4, num_actions = 2, hidden_size = 32.
    STATE_DIM = 4
    NUM_ACTIONS = 2
    HIDDEN = 32
    BATCH = 8

    key = jax.random.PRNGKey(0)
    k_params, k_state, k_action, k_state2, k_action2 = jax.random.split(key, 5)

    params = init_params(k_params, STATE_DIM, NUM_ACTIONS, HIDDEN)
    kparams = prepare_params(params, STATE_DIM)   # one-time glue, off hot path

    # Small inference-style batch.
    state = jax.random.normal(k_state, (BATCH, STATE_DIM), jnp.float32)
    action_idx = jax.random.randint(k_action, (BATCH,), 0, NUM_ACTIONS)
    action = jax.nn.one_hot(action_idx, NUM_ACTIONS, dtype=jnp.float32)

    out = jax.block_until_ready(qnet_forward(state, action, kparams))
    ref = qnet_ref(state, action, params)
    assert out.shape == (BATCH, 1), out.shape
    assert jnp.allclose(out, ref, atol=1e-5, rtol=1e-5)

    # Larger training-style batch: exercises padding + multi-tile parallel grid.
    B2 = 1000
    state2 = jax.random.normal(k_state2, (B2, STATE_DIM), jnp.float32)
    action2 = jax.nn.one_hot(
        jax.random.randint(k_action2, (B2,), 0, NUM_ACTIONS),
        NUM_ACTIONS, dtype=jnp.float32)
    out2 = jax.block_until_ready(qnet_forward(state2, action2, kparams))
    ref2 = qnet_ref(state2, action2, params)
    assert out2.shape == (B2, 1), out2.shape
    assert jnp.allclose(out2, ref2, atol=1e-5, rtol=1e-5)

    print("KERNEL_OK")
</pallas_src>

<mosaic_0001>
module attributes {stable_mosaic.version = 11 : i64} {
  func.func @qnet_kernel(%arg0: i32, %arg1: memref<8x4xf32, #tpu.memory_space<vmem>>, %arg2: memref<8x2xf32, #tpu.memory_space<vmem>>, %arg3: memref<4x32xf32, #tpu.memory_space<vmem>>, %arg4: memref<2x32xf32, #tpu.memory_space<vmem>>, %arg5: memref<1x32xf32, #tpu.memory_space<vmem>>, %arg6: memref<32x32xf32, #tpu.memory_space<vmem>>, %arg7: memref<32x1xf32, #tpu.memory_space<vmem>>, %arg8: memref<32x1xf32, #tpu.memory_space<vmem>>, %arg9: memref<1x1xf32, #tpu.memory_space<vmem>>, %arg10: memref<1x8xf32, #tpu.memory_space<vmem>>) attributes {dimension_semantics = [#tpu.dimension_semantics<parallel>], iteration_bounds = array<i64: 1>, scalar_prefetch = 0 : i64, scratch_operands = 0 : i64, tpu.core_type = #tpu.core_type<tc>, window_params = [{transform_indices = @transform_0, window_bounds = array<i64: 8, 4>}, {transform_indices = @transform_1, window_bounds = array<i64: 8, 2>}, {pipeline_mode = #tpu.pipeline_mode<synchronous>, transform_indices = @transform_2, window_bounds = array<i64: 4, 32>}, {pipeline_mode = #tpu.pipeline_mode<synchronous>, transform_indices = @transform_3, window_bounds = array<i64: 2, 32>}, {pipeline_mode = #tpu.pipeline_mode<synchronous>, transform_indices = @transform_4, window_bounds = array<i64: 1, 32>}, {pipeline_mode = #tpu.pipeline_mode<synchronous>, transform_indices = @transform_5, window_bounds = array<i64: 32, 32>}, {pipeline_mode = #tpu.pipeline_mode<synchronous>, transform_indices = @transform_6, window_bounds = array<i64: 32, 1>}, {pipeline_mode = #tpu.pipeline_mode<synchronous>, transform_indices = @transform_7, window_bounds = array<i64: 32, 1>}, {pipeline_mode = #tpu.pipeline_mode<synchronous>, transform_indices = @transform_8, window_bounds = array<i64: 1, 1>}, {transform_indices = @transform_9, window_bounds = array<i64: 1, 8>}]} {
    %c0 = arith.constant 0 : index
    %c0_0 = arith.constant 0 : index
    %0 = vector.load %arg1[%c0, %c0_0] : memref<8x4xf32, #tpu.memory_space<vmem>>, vector<8x4xf32>
    %c0_1 = arith.constant 0 : index
    %c0_2 = arith.constant 0 : index
    %1 = vector.load %arg3[%c0_1, %c0_2] : memref<4x32xf32, #tpu.memory_space<vmem>>, vector<4x32xf32>
    %cst = arith.constant dense<0.000000e+00> : vector<8x32xf32>
    %2 = tpu.matmul %0, %1, %cst {dimension_numbers = #tpu.dot_dimension_numbers<[1], [0], [0], [1], [0, 0, 1, 1], [], []>} : vector<8x4xf32>, vector<4x32xf32>, vector<8x32xf32> -> vector<8x32xf32>
    %c0_3 = arith.constant 0 : index
    %c0_4 = arith.constant 0 : index
    %3 = vector.load %arg2[%c0_3, %c0_4] : memref<8x2xf32, #tpu.memory_space<vmem>>, vector<8x2xf32>
    %c0_5 = arith.constant 0 : index
    %c0_6 = arith.constant 0 : index
    %4 = vector.load %arg4[%c0_5, %c0_6] : memref<2x32xf32, #tpu.memory_space<vmem>>, vector<2x32xf32>
    %cst_7 = arith.constant dense<0.000000e+00> : vector<8x32xf32>
    %5 = tpu.matmul %3, %4, %cst_7 {dimension_numbers = #tpu.dot_dimension_numbers<[1], [0], [0], [1], [0, 0, 1, 1], [], []>} : vector<8x2xf32>, vector<2x32xf32>, vector<8x32xf32> -> vector<8x32xf32>
    %6 = arith.addf %2, %5 : vector<8x32xf32>
    %c0_8 = arith.constant 0 : index
    %c0_9 = arith.constant 0 : index
    %7 = vector.load %arg5[%c0_8, %c0_9] : memref<1x32xf32, #tpu.memory_space<vmem>>, vector<1x32xf32>
    %8 = vector.broadcast %7 : vector<1x32xf32> to vector<8x32xf32>
    %9 = arith.addf %6, %8 : vector<8x32xf32>
    %cst_10 = arith.constant 0.000000e+00 : f32
    %10 = vector.broadcast %cst_10 : f32 to vector<8x32xf32>
    %11 = arith.maximumf %9, %10 : vector<8x32xf32>
    %c0_11 = arith.constant 0 : index
    %c0_12 = arith.constant 0 : index
    %12 = vector.load %arg6[%c0_11, %c0_12] : memref<32x32xf32, #tpu.memory_space<vmem>>, vector<32x32xf32>
    %cst_13 = arith.constant dense<0.000000e+00> : vector<32x8xf32>
    %13 = tpu.matmul %12, %11, %cst_13 {dimension_numbers = #tpu.dot_dimension_numbers<[1], [1], [0], [0], [0, 0, 1, 0], [], []>} : vector<32x32xf32>, vector<8x32xf32>, vector<32x8xf32> -> vector<32x8xf32>
    %c0_14 = arith.constant 0 : index
    %c0_15 = arith.constant 0 : index
    %14 = vector.load %arg7[%c0_14, %c0_15] : memref<32x1xf32, #tpu.memory_space<vmem>>, vector<32x1xf32>
    %15 = vector.broadcast %14 : vector<32x1xf32> to vector<32x8xf32>
    %16 = arith.addf %13, %15 : vector<32x8xf32>
    %cst_16 = arith.constant 0.000000e+00 : f32
    %17 = vector.broadcast %cst_16 : f32 to vector<32x8xf32>
    %18 = arith.maximumf %16, %17 : vector<32x8xf32>
    %c0_17 = arith.constant 0 : index
    %c0_18 = arith.constant 0 : index
    %19 = vector.load %arg8[%c0_17, %c0_18] : memref<32x1xf32, #tpu.memory_space<vmem>>, vector<32x1xf32>
    %20 = vector.broadcast %19 : vector<32x1xf32> to vector<32x8xf32>
    %21 = arith.mulf %20, %18 : vector<32x8xf32>
    %cst_19 = arith.constant dense<0.000000e+00> : vector<8xf32>
    %22 = vector.multi_reduction <add>, %21, %cst_19 [0] : vector<32x8xf32> to vector<8xf32>
    %23 = vector.shape_cast %22 : vector<8xf32> to vector<1x8xf32>
    %c0_20 = arith.constant 0 : index
    %c0_21 = arith.constant 0 : index
    %24 = vector.load %arg9[%c0_20, %c0_21] : memref<1x1xf32, #tpu.memory_space<vmem>>, vector<1x1xf32>
    %25 = vector.broadcast %24 : vector<1x1xf32> to vector<1x8xf32>
    %26 = arith.addf %23, %25 : vector<1x8xf32>
    %c0_22 = arith.constant 0 : index
    %c0_23 = arith.constant 0 : index
    %27 = vector.load %arg10[%c0_22, %c0_23] : memref<1x8xf32, #tpu.memory_space<vmem>>, vector<1x8xf32>
    tpu.vector_store %arg10[%c0_22, %c0_23], %26 {strides = array<i32>} : memref<1x8xf32, #tpu.memory_space<vmem>>, vector<1x8xf32>,
    return
  }
  func.func @transform_0(%arg0: i32) -> (i32, i32) {
    %c0_i32 = arith.constant 0 : i32
    %c0_i32_0 = arith.constant 0 : i32
    return %arg0, %c0_i32 : i32, i32
  }
  func.func @transform_1(%arg0: i32) -> (i32, i32) {
    %c0_i32 = arith.constant 0 : i32
    %c0_i32_0 = arith.constant 0 : i32
    return %arg0, %c0_i32 : i32, i32
  }
  func.func @transform_2(%arg0: i32) -> (i32, i32) {
    %c0_i32 = arith.constant 0 : i32
    %c0_i32_0 = arith.constant 0 : i32
    %c0_i32_1 = arith.constant 0 : i32
    return %c0_i32, %c0_i32_0 : i32, i32
  }
  func.func @transform_3(%arg0: i32) -> (i32, i32) {
    %c0_i32 = arith.constant 0 : i32
    %c0_i32_0 = arith.constant 0 : i32
    %c0_i32_1 = arith.constant 0 : i32
    return %c0_i32, %c0_i32_0 : i32, i32
  }
  func.func @transform_4(%arg0: i32) -> (i32, i32) {
    %c0_i32 = arith.constant 0 : i32
    %c0_i32_0 = arith.constant 0 : i32
    %c0_i32_1 = arith.constant 0 : i32
    return %c0_i32, %c0_i32_0 : i32, i32
  }
  func.func @transform_5(%arg0: i32) -> (i32, i32) {
    %c0_i32 = arith.constant 0 : i32
    %c0_i32_0 = arith.constant 0 : i32
    %c0_i32_1 = arith.constant 0 : i32
    return %c0_i32, %c0_i32_0 : i32, i32
  }
  func.func @transform_6(%arg0: i32) -> (i32, i32) {
    %c0_i32 = arith.constant 0 : i32
    %c0_i32_0 = arith.constant 0 : i32
    %c0_i32_1 = arith.constant 0 : i32
    return %c0_i32, %c0_i32_0 : i32, i32
  }
  func.func @transform_7(%arg0: i32) -> (i32, i32) {
    %c0_i32 = arith.constant 0 : i32
    %c0_i32_0 = arith.constant 0 : i32
    %c0_i32_1 = arith.constant 0 : i32
    return %c0_i32, %c0_i32_0 : i32, i32
  }
  func.func @transform_8(%arg0: i32) -> (i32, i32) {
    %c0_i32 = arith.constant 0 : i32
    %c0_i32_0 = arith.constant 0 : i32
    %c0_i32_1 = arith.constant 0 : i32
    return %c0_i32, %c0_i32_0 : i32, i32
  }
  func.func @transform_9(%arg0: i32) -> (i32, i32) {
    %c0_i32 = arith.constant 0 : i32
    %c0_i32_0 = arith.constant 0 : i32
    return %c0_i32, %arg0 : i32, i32
  }
}

</mosaic_0001>

<llo_original>
// kernel: qnet_forward.1
$region0: #{qnet_forward.1}
  #allocation0 [shape = 'u32[]', space=smem, size = 0x4, offset = 0x4, fixed_abs, tag = 'smem constant byte address 0x4 - core index']
  #allocation1 [shape = 'u32[72,128]{1,0:T(1,128)}', space=vmem, size = 0x9000, scoped, tag = 'internal scratch']
  #allocation2 [shape = 'f32[1,1]{1,0:T(1,128)S(1)}', space=vmem, size = 0x200, scoped, tag = 'scoped memory for qnet_forward.1']
  %s0 = inlined_call_operand.vmem [shape: f32[8,4], index: 0, kind: input, shape index: {}]
  %s1 = inlined_call_operand.vmem [shape: f32[8,2], index: 1, kind: input, shape index: {}]
  %s2 = inlined_call_operand.vmem [shape: f32[4,32], index: 2, kind: input, shape index: {}]
  %s3 = inlined_call_operand.vmem [shape: f32[2,32], index: 3, kind: input, shape index: {}]
  %s4 = inlined_call_operand.vmem [shape: f32[1,32], index: 4, kind: input, shape index: {}]
  %s5 = inlined_call_operand.vmem [shape: f32[32,32], index: 5, kind: input, shape index: {}]
  %s6 = inlined_call_operand.vmem [shape: f32[32,1], index: 6, kind: input, shape index: {}]
  %s7 = inlined_call_operand.vmem [shape: f32[32,1], index: 7, kind: input, shape index: {}]
  %s8 = inlined_call_operand.<no memory space> [shape: f32[1,1], index: 8, kind: input, shape index: {}]
  %s9 = inlined_call_operand.hbm [shape: f32[1,8], index: 9, kind: output, shape index: {}]
  %s10 = sld [smem:[#allocation0]]
  $region46: #{qnet_forward.1} parent=0
    _
  %s12 = ssub.s32 1, %s10
  %s13 = scalar_select 0, %s12, %s10
  %v14 = vstv %s8
  %15 = vst [vmem:[#allocation2] sm:$0x1] %v14
  $region1: #{qnet_forward.1} parent=0
    #allocation3 [shape = 'u8[512]{0}', space=vmem, size = 0x400, scoped, tag = 'output window, operand 0, single buffered']
    #allocation4 [shape = 's32[1]{0}', space=sflag, size = 0x4, scoped, tag = 'scoped memory for qnet_forward.1']
    %16 = vsyncpa [#allocation4], 0
    // Predicated region
    $region2: #{qnet_forward.1} parent=1 // pred_check
      _
    $region3: #{qnet_forward.1} parent=1 // pred_check_branch
      %18 = sbr.rel (0) target = $region5
    $region4: #{qnet_forward.1} parent=1 // pred_region
      _
    $region5: #{qnet_forward.1} parent=1 // pred_fallthru
      _
    // Predicated region
    $region6: #{qnet_forward.1} parent=1 // pred_check
      _
    $region7: #{qnet_forward.1} parent=1 // pred_check_branch
      %20 = sbr.rel (0) target = $region9
    $region8: #{qnet_forward.1} parent=1 // pred_region
      _
    $region9: #{qnet_forward.1} parent=1 // pred_fallthru
      _
    // Predicated region
    $region10: #{qnet_forward.1} parent=1 // pred_check
      _
    $region11: #{qnet_forward.1} parent=1 // pred_check_branch
      %22 = sbr.rel (0) target = $region13
    $region12: #{qnet_forward.1} parent=1 // pred_region
      _
    $region13: #{qnet_forward.1} parent=1 // pred_fallthru
      _
    // Predicated region
    $region14: #{qnet_forward.1} parent=1 // pred_check
      _
    $region15: #{qnet_forward.1} parent=1 // pred_check_branch
      %24 = sbr.rel (0) target = $region17
    $region16: #{qnet_forward.1} parent=1 // pred_region
      _
    $region17: #{qnet_forward.1} parent=1 // pred_fallthru
      _
    // Predicated region
    $region18: #{qnet_forward.1} parent=1 // pred_check
      _
    $region19: #{qnet_forward.1} parent=1 // pred_check_branch
      %26 = sbr.rel (0) target = $region21
    $region20: #{qnet_forward.1} parent=1 // pred_region
      _
    $region21: #{qnet_forward.1} parent=1 // pred_fallthru
      _
    // Predicated region
    $region22: #{qnet_forward.1} parent=1 // pred_check
      _
    $region23: #{qnet_forward.1} parent=1 // pred_check_branch
      %28 = sbr.rel (0) target = $region25
    $region24: #{qnet_forward.1} parent=1 // pred_region
      _
    $region25: #{qnet_forward.1} parent=1 // pred_fallthru
      _
    // Predicated region
    $region26: #{qnet_forward.1} parent=1 // pred_check
      _
    $region27: #{qnet_forward.1} parent=1 // pred_check_branch
      %30 = sbr.rel (0) target = $region29
    $region28: #{qnet_forward.1} parent=1 // pred_region
      _
    $region29: #{qnet_forward.1} parent=1 // pred_fallthru
      _
    // Predicated region
    $region30: #{qnet_forward.1} parent=1 // pred_check
      _
    $region31: #{qnet_forward.1} parent=1 // pred_check_branch
      %32 = sbr.rel (0) target = $region33
    $region32: #{qnet_forward.1} parent=1 // pred_region
      _
    $region33: #{qnet_forward.1} parent=1 // pred_fallthru
      _
    // Predicated region
    $region34: #{qnet_forward.1} parent=1 // pred_check
      _
    $region35: #{qnet_forward.1} parent=1 // pred_check_branch
      %34 = sbr.rel (0) target = $region37
    $region36: #{qnet_forward.1} parent=1 // pred_region
      _
    $region37: #{qnet_forward.1} parent=1 // pred_fallthru
      _
    %v35 = vld [vmem:[%s0] sm:$0xff]
    %v36 = vld [vmem:[%s2] sm:$0xf]
    %v37 = vld [vmem:[%s1] sm:$0xff]
    %v38 = vld [vmem:[%s3] sm:$0x3]
    %vm39 = vcmask 15360
    %v41 = vsel %vm39, %v37, 0
    %vm43 = vcmask 1041408
    %v45 = vsel %vm43, %v38, 0
    %47 = vmatpush.msra.mxu0 0.0
    %48 = vmatpush.msra.mxu0 0.0
    %49 = vmatpush.msra.mxu0 0.0
    %50 = vmatpush.msra.mxu0 0.0
    %51 = vmatpush.msra.mxu0 0.0
    %52 = vmatpush.msra.mxu0 0.0
    %53 = vmatpush.msra.mxu0 0.0
    %54 = vmatpush.msra.mxu0 0.0
    %55 = vmatpush.msra.mxu0 0.0
    %56 = vmatpush.msra.mxu0 0.0
    %57 = vmatpush.msra.mxu0 0.0
    %58 = vmatpush.msra.mxu0 0.0
    %59 = vmatpush.msra.mxu0 0.0
    %60 = vmatpush.msra.mxu0 0.0
    %61 = vmatpush.msra.mxu0 0.0
    %62 = vmatpush.msra.mxu0 %v45
    %63 = vmatmul.f32.gmra.mxu0 %v41
    %v64 = vpop.f32.mrf.mxu0
    %v65 = vadd.f32 0.0, %v64
    %66 = vdwg.mxu0
    %vm67 = vcmask 31744
    %v69 = vsel %vm67, %v35, 0
    %vm71 = vcmask 1043456
    %v73 = vsel %vm71, %v36, 0
    %75 = vmatpush.msra.mxu0 0.0
    %76 = vmatpush.msra.mxu0 0.0
    %77 = vmatpush.msra.mxu0 0.0
    %78 = vmatpush.msra.mxu0 0.0
    %79 = vmatpush.msra.mxu0 0.0
    %80 = vmatpush.msra.mxu0 0.0
    %81 = vmatpush.msra.mxu0 0.0
    %82 = vmatpush.msra.mxu0 0.0
    %83 = vmatpush.msra.mxu0 0.0
    %84 = vmatpush.msra.mxu0 0.0
    %85 = vmatpush.msra.mxu0 0.0
    %86 = vmatpush.msra.mxu0 0.0
    %87 = vmatpush.msra.mxu0 0.0
    %88 = vmatpush.msra.mxu0 0.0
    %89 = vmatpush.msra.mxu0 0.0
    %90 = vmatpush.msra.mxu0 %v73
    %91 = vmatmul.f32.gmra.mxu0 %v69
    %v92 = vpop.f32.mrf.mxu0
    %v93 = vadd.f32 %v65, %v92
    %94 = vdwg.mxu0
    %v95 = vld [vmem:[%s4] sm:$0x1]
    %v97 = vperm.slane %v95, 0
    %v99 = vadd.f32 %v93, %v97
    %v100 = vmax.f32 %v99, 0.0
    %v101 = vld [vmem:[%s5] sm:$0xff]
    %v102 = vld [vmem:[%s5 + $0x8] sm:$0xff]
    %v103 = vld [vmem:[%s5 + $0x10] sm:$0xff]
    %v104 = vld [vmem:[%s5 + $0x18] sm:$0xff]
    %v105 = vld [vmem:[%s6] sm:$0xff]
    %v106 = vld [vmem:[%s6 + $0x8] sm:$0xff]
    %v107 = vld [vmem:[%s6 + $0x10] sm:$0xff]
    %v108 = vld [vmem:[%s6 + $0x18] sm:$0xff]
    %110 = vset.pattern.permute.xlu0 0
    %111 = vperm.xlu0 %110, %v105
    %v112 = vpop.permute.xlu0 %111
    %115 = vset.pattern.permute.xlu0 0
    %116 = vperm.xlu0 %115, %v106
    %v117 = vpop.permute.xlu0 %116
    %120 = vset.pattern.permute.xlu0 0
    %121 = vperm.xlu0 %120, %v107
    %v122 = vpop.permute.xlu0 %121
    %125 = vset.pattern.permute.xlu0 0
    %126 = vperm.xlu0 %125, %v108
    %v127 = vpop.permute.xlu0 %126
    %vm129 = vcmask 261120
    %v131 = vsel %vm129, %v101, 0
    %v134 = vsel %vm129, %v102, 0
    %v137 = vsel %vm129, %v103, 0
    %v140 = vsel %vm129, %v104, 0
    %v143 = vsel %vm129, %v100, 0
    %145 = vmatpush.xpose.msra.mxu0 0.0
    %146 = vmatpush.xpose.msra.mxu0 0.0
    %147 = vmatpush.xpose.msra.mxu0 0.0
    %148 = vmatpush.xpose.msra.mxu0 0.0
    %149 = vmatpush.xpose.msra.mxu0 0.0
    %150 = vmatpush.xpose.msra.mxu0 0.0
    %151 = vmatpush.xpose.msra.mxu0 0.0
    %152 = vmatpush.xpose.msra.mxu0 0.0
    %153 = vmatpush.xpose.msra.mxu0 0.0
    %154 = vmatpush.xpose.msra.mxu0 0.0
    %155 = vmatpush.xpose.msra.mxu0 0.0
    %156 = vmatpush.xpose.msra.mxu0 0.0
    %157 = vmatpush.xpose.msra.mxu0 0.0
    %158 = vmatpush.xpose.msra.mxu0 0.0
    %159 = vmatpush.xpose.msra.mxu0 0.0
    %160 = vmatpush.xpose.msra.mxu0 %v143
    %161 = vmatmul.f32.gmra.mxu0 %v131
    %v162 = vpop.f32.mrf.mxu0
    %v163 = vadd.f32 %v112, %v162
    %164 = vmatmul.f32.gmra.mxu0 %v134
    %v165 = vpop.f32.mrf.mxu0
    %v166 = vadd.f32 %v117, %v165
    %167 = vmatmul.f32.gmra.mxu0 %v137
    %v168 = vpop.f32.mrf.mxu0
    %v169 = vadd.f32 %v122, %v168
    %170 = vmatmul.f32.gmra.mxu0 %v140
    %v171 = vpop.f32.mrf.mxu0
    %v172 = vadd.f32 %v127, %v171
    %173 = vdwg.mxu0
    %v174 = vmax.f32 %v163, 0.0
    %v175 = vmax.f32 %v166, 0.0
    %v176 = vmax.f32 %v169, 0.0
    %v177 = vmax.f32 %v172, 0.0
    %v178 = vld [vmem:[%s7] sm:$0xff]
    %v179 = vld [vmem:[%s7 + $0x8] sm:$0xff]
    %v180 = vld [vmem:[%s7 + $0x10] sm:$0xff]
    %v181 = vld [vmem:[%s7 + $0x18] sm:$0xff]
    %183 = vset.pattern.permute.xlu0 0
    %184 = vperm.xlu0 %183, %v178
    %v185 = vpop.permute.xlu0 %184
    %188 = vset.pattern.permute.xlu0 0
    %189 = vperm.xlu0 %188, %v179
    %v190 = vpop.permute.xlu0 %189
    %193 = vset.pattern.permute.xlu0 0
    %194 = vperm.xlu0 %193, %v180
    %v195 = vpop.permute.xlu0 %194
    %198 = vset.pattern.permute.xlu0 0
    %199 = vperm.xlu0 %198, %v181
    %v200 = vpop.permute.xlu0 %199
    %v202 = vmul.f32 %v185, %v174
    %v203 = vmul.f32 %v190, %v175
    %v204 = vmul.f32 %v195, %v176
    %v205 = vmul.f32 %v200, %v177
    %vm206 = vcmask 64512
    %v207 = vsel %vm206, %v202, 0.0
    %v208 = vsel %vm206, %v203, 0.0
    %v209 = vadd.f32 %v207, %v208
    %v210 = vsel %vm206, %v204, 0.0
    %v211 = vadd.f32 %v209, %v210
    %v212 = vsel %vm206, %v205, 0.0
    %v213 = vadd.f32 %v211, %v212
    %v214 = vrot.slane %v213, 4
    %v215 = vadd.f32 %v213, %v214
    %v216 = vrot.slane %v215, 2
    %v217 = vadd.f32 %v215, %v216
    %v218 = vrot.slane %v217, 1
    %v219 = vadd.f32 %v217, %v218
    %v220 = vld [vmem:[#allocation2] sm:$0x1]
    %222 = vset.pattern.permute.xlu0 0
    %223 = vperm.xlu0 %222, %v220
    %v224 = vpop.permute.xlu0 %223
    %v226 = vperm.slane %v224, 0
    %v227 = vadd.f32 %v219, %v226
    %vm228 = vcmask 57344
    %229 = vst.msk [vmem:[#allocation3] sm:$0x1] %vm228, %v227
    // Predicated region
    $region38: #{qnet_forward.1} parent=1 // pred_check
      _
    $region39: #{qnet_forward.1} parent=1 // pred_check_branch
      %231 = sbr.rel (0) target = $region41
    $region40: #{qnet_forward.1} parent=1 // pred_region
      %233 = vsyncadd [#allocation4], 0
      %s235 = sshll.u32 [#allocation3], 4
      %s236 = int_to_ptr.vmem [resolvable:$true] %s235
      %s237 = sshll.u32 %s9, 4
      %s238 = int_to_ptr.hbm [resolvable:$true] %s237
      %240 = dma.vmem_to_hbm [thread:$0]  %s236, 16, %s238, [#allocation4]
    $region41: #{qnet_forward.1} parent=1 // pred_fallthru
      _
    // Predicated region
    $region42: #{qnet_forward.1} parent=1 // pred_check
      _
    $region43: #{qnet_forward.1} parent=1 // pred_check_branch
      %242 = sbr.rel (0) target = $region45
    $region44: #{qnet_forward.1} parent=1 // pred_region
      %244 = dma.done [#allocation4], 16
    $region45: #{qnet_forward.1} parent=1 // pred_fallthru
      _
    %245 = vsyncpa [#allocation4], 1

</llo_original>
